<compile_context>
chip_gen: v7x
topology: tpu7x:2x2x1
jax: 0.10.0
libtpu: 0.0.40
codegen_flags: <defaults>
</compile_context>

<pallas_src>
import math

import jax
import jax.numpy as jnp
from jax.experimental import pallas as pl
from jax.experimental.pallas import tpu as pltpu


def _round_up(x, m):
    return ((x + m - 1) // m) * m


def _stable_sigmoid(z):
    # 0.5*(tanh(z/2)+1): numerically stable, tanh rides the EUP slot.
    return 0.5 * (jnp.tanh(0.5 * z) + 1.0)


# ----------------------------------------------------------------------------
# Pallas kernels
# ----------------------------------------------------------------------------

def _point_sampler_kernel(xt_ref, a_ref, w1t_ref, b1t_ref, w2t_ref,
                          out_ref, acc_ref):
    # GCN layer in transposed (lane-dense) layout:
    #   (A @ X)^T = X^T @ A^T  -> acc (d, tn)   [bf16 operands, f32 accumulate]
    #   h^T = relu(W1^T @ (AX)^T + b1^T); scores^T = W2^T @ h^T -> (1, tn)
    k = pl.program_id(1)

    @pl.when(k == 0)
    def _():
        acc_ref[...] = jnp.zeros_like(acc_ref)

    # Contract over A's column dim (dim 1), so A never needs a host transpose.
    acc_ref[...] += jax.lax.dot_general(
        xt_ref[...], a_ref[...],
        (((1,), (1,)), ((), ())),
        preferred_element_type=jnp.float32)

    @pl.when(k == pl.num_programs(1) - 1)
    def _():
        hh = jnp.maximum(
            jnp.dot(w1t_ref[...], acc_ref[...].astype(jnp.bfloat16),
                    preferred_element_type=jnp.float32) + b1t_ref[...],
            0.0)                                                    # (h, tn)
        out_ref[...] = jnp.dot(w2t_ref[...], hh.astype(jnp.bfloat16),
                               preferred_element_type=jnp.float32)  # (1, tn)


def _edge_face_kernel(xi_ref, xj_ref, epw_ref, epb_ref,
                      w1t_ref, b1t_ref, w2t_ref, b2t_ref,
                      w3t_ref, b3t_ref, wot_ref, bo_ref,
                      sim_ref, face_ref, he_i_ref):
    # Grid: (si row blocks [parallel], sj col blocks [arbitrary]).
    j = pl.program_id(1)
    h = epw_ref.shape[1]
    scale = 1.0 / math.sqrt(h)

    @pl.when(j == 0)
    def _():
        # EdgePredictor embedding of the resident row block (reused for all j).
        he_i_ref[...] = jnp.maximum(
            jnp.dot(xi_ref[...], epw_ref[...],
                    preferred_element_type=jnp.float32) + epb_ref[...],
            0.0)                                                    # (ts, h)
        # FaceClassifier MLP on the row block only (independent of j),
        # transposed layout -> lane-dense (1, ts) output.
        a1 = jnp.maximum(
            jax.lax.dot_general(w1t_ref[...], xi_ref[...],
                                (((1,), (1,)), ((), ())),
                                preferred_element_type=jnp.float32)
            + b1t_ref[...], 0.0)                                    # (h, ts)
        a2 = jnp.maximum(
            jnp.dot(w2t_ref[...], a1.astype(jnp.bfloat16),
                    preferred_element_type=jnp.float32) + b2t_ref[...], 0.0)
        a3 = jnp.maximum(
            jnp.dot(w3t_ref[...], a2.astype(jnp.bfloat16),
                    preferred_element_type=jnp.float32) + b3t_ref[...], 0.0)
        z = jnp.dot(wot_ref[...], a3.astype(jnp.bfloat16),
                    preferred_element_type=jnp.float32) + bo_ref[...]
        face_ref[...] = _stable_sigmoid(z)                          # (1, ts)

    # Column-block embedding (recomputed each step — tiny vs. the (ts,ts) dot).
    he_j = jnp.maximum(
        jnp.dot(xj_ref[...], epw_ref[...],
                preferred_element_type=jnp.float32) + epb_ref[...],
        0.0)                                                        # (ts, h)
    # he_i @ he_j^T without an explicit transpose: contract last dims of both.
    logits = jax.lax.dot_general(
        he_i_ref[...].astype(jnp.bfloat16), he_j.astype(jnp.bfloat16),
        (((1,), (1,)), ((), ())),
        preferred_element_type=jnp.float32) * scale                 # (ts, ts)
    sim_ref[...] = _stable_sigmoid(logits).astype(jnp.bfloat16)


# ----------------------------------------------------------------------------
# pallas_call wrappers
# ----------------------------------------------------------------------------

def _pick_sampler_tiles(n_pad):
    # tn: parallel row axis — largest tile that still leaves >= 2 blocks so
    # both v7x TensorCores get work; tk: reduction axis, 256-512 preferred.
    tn = 128
    for t in (2048, 1024, 512, 256):
        if n_pad % t == 0 and n_pad // t >= 2:
            tn = t
            break
    tk = 128
    for t in (512, 256):
        if n_pad % t == 0:
            tk = t
            break
    return tn, tk


def point_sampler_scores(a_norm_pad, xt_pad, prep, n):
    """Tiled GCN scores over the padded bf16 adjacency, returned as (n,) f32."""
    n_pad = a_norm_pad.shape[0]
    d = xt_pad.shape[0]
    h = prep["ps_w1t"].shape[0]
    tn, tk = _pick_sampler_tiles(n_pad)
    grid = (n_pad // tn, n_pad // tk)

    # Explicit VMEM budget (double-buffered bf16 A/x^T tiles + f32 acc + out),
    # clamped well under v7x's 64 MiB physical VMEM.
    vmem_bytes = (2 * tn * tk * 2 + 2 * d * tk * 2 + 2 * tn * 4
                  + d * tn * 4 + (4 << 20))
    vmem_bytes = int(min(max(vmem_bytes, 16 << 20), 48 << 20))

    scores = pl.pallas_call(
        _point_sampler_kernel,
        grid=grid,
        in_specs=[
            pl.BlockSpec((d, tk), lambda j, k: (0, k)),    # x^T (bf16)
            pl.BlockSpec((tn, tk), lambda j, k: (j, k)),   # A_norm (bf16)
            pl.BlockSpec((h, d), lambda j, k: (0, 0)),     # W1^T (bf16)
            pl.BlockSpec((h, 1), lambda j, k: (0, 0)),     # b1^T (f32)
            pl.BlockSpec((1, h), lambda j, k: (0, 0)),     # w2^T (bf16)
        ],
        out_specs=pl.BlockSpec((1, tn), lambda j, k: (0, j)),
        out_shape=jax.ShapeDtypeStruct((1, n_pad), jnp.float32),
        scratch_shapes=[pltpu.VMEM((d, tn), jnp.float32)],
        compiler_params=pltpu.CompilerParams(
            dimension_semantics=("parallel", "arbitrary"),
            vmem_limit_bytes=vmem_bytes),
    )(xt_pad, a_norm_pad, prep["ps_w1t"], prep["ps_b1t"], prep["ps_w2t"])

    # ps_b2 is a per-node-constant bias: softmax is shift-invariant, but add
    # it for exact semantic parity with the reference.
    return scores[0, :n] + prep["ps_b2"]


def _pick_edge_tile(s_pad):
    for t in (512, 256):
        if s_pad % t == 0 and s_pad // t >= 2:
            return t
    return 128


def edge_face_call(sampled_x, prep):
    """Fused EdgePredictor similarity + FaceClassifier scores (tiled grid)."""
    s, d = sampled_x.shape
    h = prep["fc_w2t"].shape[0]
    s_pad = _round_up(s, 128)
    xb = jnp.pad(sampled_x, ((0, s_pad - s), (0, 0))).astype(jnp.bfloat16)
    ts = _pick_edge_tile(s_pad)
    grid = (s_pad // ts, s_pad // ts)

    vmem_bytes = (4 * ts * d * 2 + 2 * ts * ts * 2 + 2 * ts * 4
                  + ts * h * 4 + (4 << 20))
    vmem_bytes = int(min(max(vmem_bytes, 16 << 20), 48 << 20))

    sim, face = pl.pallas_call(
        _edge_face_kernel,
        grid=grid,
        in_specs=[
            pl.BlockSpec((ts, d), lambda i, j: (i, 0)),    # x row block si
            pl.BlockSpec((ts, d), lambda i, j: (j, 0)),    # x row block sj
            pl.BlockSpec((d, h), lambda i, j: (0, 0)),     # EP weight (bf16)
            pl.BlockSpec((1, h), lambda i, j: (0, 0)),     # EP bias
            pl.BlockSpec((h, d), lambda i, j: (0, 0)),     # FC W1^T (folded)
            pl.BlockSpec((h, 1), lambda i, j: (0, 0)),     # FC b1^T
            pl.BlockSpec((h, h), lambda i, j: (0, 0)),     # FC W2^T
            pl.BlockSpec((h, 1), lambda i, j: (0, 0)),     # FC b2^T
            pl.BlockSpec((h, h), lambda i, j: (0, 0)),     # FC W3^T
            pl.BlockSpec((h, 1), lambda i, j: (0, 0)),     # FC b3^T
            pl.BlockSpec((1, h), lambda i, j: (0, 0)),     # FC Wout^T
            pl.BlockSpec((1, 1), lambda i, j: (0, 0)),     # FC bout
        ],
        out_specs=[
            pl.BlockSpec((ts, ts), lambda i, j: (i, j)),   # sim (bf16)
            pl.BlockSpec((1, ts), lambda i, j: (0, i)),    # face (f32, lane-dense)
        ],
        out_shape=[jax.ShapeDtypeStruct((s_pad, s_pad), jnp.bfloat16),
                   jax.ShapeDtypeStruct((1, s_pad), jnp.float32)],
        scratch_shapes=[pltpu.VMEM((ts, h), jnp.float32)],   # he_i
        compiler_params=pltpu.CompilerParams(
            dimension_semantics=("parallel", "arbitrary"),
            vmem_limit_bytes=vmem_bytes),
    )(xb, xb, prep["ep_w"], prep["ep_b"],
      prep["fc_w1t"], prep["fc_b1t"], prep["fc_w2t"], prep["fc_b2t"],
      prep["fc_w3t"], prep["fc_b3t"], prep["fc_wot"], prep["fc_bo"])
    return sim[:s, :s], face[0, :s]


# ----------------------------------------------------------------------------
# Glue (plain JAX): graph bookkeeping, parameter init, forward orchestration
# ----------------------------------------------------------------------------

def build_norm_adj(edge_index, n):
    src, dst = edge_index
    ones = jnp.ones(src.shape, jnp.float32)
    a = jnp.zeros((n, n), jnp.float32).at[src, dst].max(ones)
    a = jnp.minimum(a + jnp.eye(n, dtype=jnp.float32), 1.0)
    deg = a.sum(axis=1)
    dinv = 1.0 / jnp.sqrt(jnp.maximum(deg, 1e-12))
    # bf16 in HBM: the [N,N] adjacency is the dominant DMA stream of the
    # mem-bound point sampler; writing bf16 once halves write+read traffic.
    return (a * dinv[:, None] * dinv[None, :]).astype(jnp.bfloat16)


def init_params(key, input_dim, hidden_dim):
    ks = jax.random.split(key, 8)
    s = 0.1
    return {
        "ps_w1": jax.random.normal(ks[0], (input_dim, hidden_dim), jnp.float32) * s,
        "ps_b1": jnp.zeros((1, hidden_dim), jnp.float32),
        "ps_w2": jax.random.normal(ks[1], (hidden_dim, 1), jnp.float32) * s,
        "ps_b2": jnp.zeros((1, 1), jnp.float32),
        "ep_w": jax.random.normal(ks[2], (input_dim, hidden_dim), jnp.float32) * s,
        "ep_b": jnp.zeros((1, hidden_dim), jnp.float32),
        "fc_w1": jax.random.normal(ks[3], (2 * input_dim, hidden_dim), jnp.float32) * s,
        "fc_b1": jnp.zeros((1, hidden_dim), jnp.float32),
        "fc_w2": jax.random.normal(ks[4], (hidden_dim, hidden_dim), jnp.float32) * s,
        "fc_b2": jnp.zeros((1, hidden_dim), jnp.float32),
        "fc_w3": jax.random.normal(ks[5], (hidden_dim, hidden_dim), jnp.float32) * s,
        "fc_b3": jnp.zeros((1, hidden_dim), jnp.float32),
        "fc_wo": jax.random.normal(ks[6], (hidden_dim, 1), jnp.float32) * s,
        "fc_bo": jnp.zeros((1, 1), jnp.float32),
    }


def prepare_params(params, input_dim):
    """Kernel-ready parameter layouts, computed ONCE (hoisted out of forward)."""
    d = input_dim
    bf = jnp.bfloat16
    return {
        # PointSampler (transposed, bf16 MXU operands, f32 biases).
        "ps_w1t": params["ps_w1"].T.astype(bf),                     # (h, d)
        "ps_b1t": params["ps_b1"].T,                                # (h, 1)
        "ps_w2t": params["ps_w2"].T.astype(bf),                     # (1, h)
        "ps_b2": params["ps_b2"][0, 0],
        # EdgePredictor.
        "ep_w": params["ep_w"].astype(bf),                          # (d, h)
        "ep_b": params["ep_b"],                                     # (1, h)
        # FaceClassifier: fold the (x, pos) concat (pos == x here):
        #   concat([x, x]) @ W1 == x @ (W1[:d] + W1[d:]).
        "fc_w1t": (params["fc_w1"][:d] + params["fc_w1"][d:]).T.astype(bf),
        "fc_b1t": params["fc_b1"].T,
        "fc_w2t": params["fc_w2"].T.astype(bf),
        "fc_b2t": params["fc_b2"].T,
        "fc_w3t": params["fc_w3"].T.astype(bf),
        "fc_b3t": params["fc_b3"].T,
        "fc_wot": params["fc_wo"].T.astype(bf),
        "fc_bo": params["fc_bo"],                                   # (1, 1)
    }


def neural_mesh_simplification_forward(x, edge_index, prep, k, sample_key):
    n = x.shape[0]
    n_pad = _round_up(n, 128)

    # --- PointSampler (Pallas, tiled) + softmax over nodes ---
    a_norm = build_norm_adj(edge_index, n)                          # bf16 [n, n]
    a_norm = jnp.pad(a_norm, ((0, n_pad - n), (0, n_pad - n)))
    xt = jnp.pad(x, ((0, n_pad - n), (0, 0))).T.astype(jnp.bfloat16)  # [d, n_pad]
    scores = point_sampler_scores(a_norm, xt, prep, n)              # [n]
    sampled_probs = jax.nn.softmax(scores)                          # [n]

    # --- multinomial sampling without replacement + unique (sort) ---
    # TODO(synk): torch.multinomial -> jax.random.choice(replace=False); unique
    # is a sort here since sampled indices are already distinct.
    num_samples = min(max(int(0.5 * n), 1), n - 1)
    idx = jax.random.choice(sample_key, n, (num_samples,), replace=False,
                            p=sampled_probs)
    sampled_indices = jnp.sort(jnp.clip(idx, 0, n - 1)).astype(jnp.int32)
    s = num_samples

    sampled_x = x[sampled_indices]
    sampled_vertices = sampled_x          # data.pos is None branch

    # --- subgraph with relabel (static-size, validity mask) ---
    # TODO(synk): subgraph has dynamic edge count; kept padded with a mask.
    node_map = jnp.full((n,), -1, jnp.int32).at[sampled_indices].set(
        jnp.arange(s, dtype=jnp.int32))
    src, dst = edge_index
    new_src, new_dst = node_map[src], node_map[dst]
    e_valid = (new_src >= 0) & (new_dst >= 0)
    sub_src = jnp.where(e_valid, new_src, 0)
    sub_dst = jnp.where(e_valid, new_dst, 0)

    # --- fused EdgePredictor + FaceClassifier (single tiled Pallas launch) ---
    sim, node_face_probs = edge_face_call(sampled_x, prep)          # [s,s] bf16, [s]
    edge_probs = jnp.where(e_valid, sim[sub_src, sub_dst].astype(jnp.float32), 0.0)
    edge_index_pred = jnp.stack([sub_src, sub_dst]).astype(jnp.int32)

    # --- candidate triangles (plain JAX: [s,P] arrays are < one vreg) ---
    adj = jnp.zeros((s, s), jnp.float32).at[sub_src, sub_dst].max(edge_probs)
    k_tri = min(k, s - 1)
    _, knn_idx = jax.lax.top_k(adj, k_tri)                          # [s, k_tri]
    ju, lu = jnp.triu_indices(k_tri, k=1)                           # P pairs
    n1 = knn_idx[:, ju]                                             # [s, P]
    n2 = knn_idx[:, lu]                                             # [s, P]
    rows = jnp.arange(s, dtype=jnp.int32)[:, None]
    a_in1 = adj[rows, n1]
    a_in2 = adj[rows, n2]
    a_n1n2 = adj[n1, n2]
    valid = a_n1n2 > 0.0
    tri_probs = jnp.where(valid, jnp.cbrt(a_in1 * a_in2 * a_n1n2), 0.0)
    candidate_triangles = jnp.stack(
        [jnp.broadcast_to(rows, n1.shape), n1, n2], axis=-1
    ).reshape(-1, 3).astype(jnp.int32)                              # [s*P, 3] padded
    triangle_probs = tri_probs.reshape(-1)
    triangle_valid_mask = valid.reshape(-1)

    # --- face probs: per-node scores padded to #candidates (mirrors reference) ---
    t_max = candidate_triangles.shape[0]
    face_probs = jnp.zeros((t_max,), jnp.float32).at[:min(s, t_max)].set(
        node_face_probs[:t_max])

    # --- simplified faces (boolean mask instead of dynamic filtering) ---
    # TODO(synk): torch boolean-mask selection is dynamic-shape; return mask.
    simplified_faces_mask = triangle_valid_mask & (face_probs > 0.5)

    return {
        "sampled_indices": sampled_indices,
        "sampled_probs": sampled_probs,
        "sampled_vertices": sampled_vertices,
        "edge_index": edge_index_pred,
        "edge_probs": edge_probs,
        "edge_valid_mask": e_valid,
        "candidate_triangles": candidate_triangles,
        "triangle_probs": triangle_probs,
        "triangle_valid_mask": triangle_valid_mask,
        "face_probs": face_probs,
        "simplified_faces": candidate_triangles,
        "simplified_faces_mask": simplified_faces_mask,
    }


# ----------------------------------------------------------------------------
# Main
# ----------------------------------------------------------------------------

if __name__ == "__main__":
    N = 64          # number of mesh vertices
    INPUT_DIM = 8   # vertex feature dim
    HIDDEN_DIM = 32
    K = 4           # neighbourhood size for triangle candidates
    E = 256         # number of (directed) input edges

    root = jax.random.PRNGKey(0)
    k_x, k_src, k_dst, k_par, k_samp = jax.random.split(root, 5)

    x = jax.random.normal(k_x, (N, INPUT_DIM), jnp.float32)
    src = jax.random.randint(k_src, (E,), 0, N, dtype=jnp.int32)
    dst = jax.random.randint(k_dst, (E,), 0, N, dtype=jnp.int32)
    edge_index = jnp.stack([src, dst])

    params = init_params(k_par, INPUT_DIM, HIDDEN_DIM)
    prep = prepare_params(params, INPUT_DIM)     # hoisted, once per model

    out = neural_mesh_simplification_forward(x, edge_index, prep, K, k_samp)
    out = jax.block_until_ready(out)

    # light sanity checks
    assert out["sampled_probs"].shape == (N,)
    assert out["candidate_triangles"].shape[1] == 3
    assert out["face_probs"].shape[0] == out["candidate_triangles"].shape[0]
    assert bool(jnp.all(jnp.isfinite(out["sampled_probs"])))
    assert bool(jnp.all(jnp.isfinite(out["triangle_probs"])))
    assert bool(jnp.all(jnp.isfinite(out["edge_probs"])))
    assert bool(jnp.all(jnp.isfinite(out["face_probs"])))

    print("KERNEL_OK")
</pallas_src>

<mosaic_0001>
module attributes {stable_mosaic.version = 11 : i64} {
  func.func @_point_sampler_kernel(%arg0: i32, %arg1: i32, %arg2: memref<8x128xbf16, #tpu.memory_space<vmem>>, %arg3: memref<128x128xbf16, #tpu.memory_space<vmem>>, %arg4: memref<32x8xbf16, #tpu.memory_space<vmem>>, %arg5: memref<32x1xf32, #tpu.memory_space<vmem>>, %arg6: memref<1x32xbf16, #tpu.memory_space<vmem>>, %arg7: memref<1x128xf32, #tpu.memory_space<vmem>>, %arg8: memref<8x128xf32, #tpu.memory_space<vmem>>) attributes {dimension_semantics = [#tpu.dimension_semantics<parallel>, #tpu.dimension_semantics<arbitrary>], iteration_bounds = array<i64: 1, 1>, scalar_prefetch = 0 : i64, scratch_operands = 1 : i64, tpu.core_type = #tpu.core_type<tc>, window_params = [{transform_indices = @transform_0, window_bounds = array<i64: 8, 128>}, {transform_indices = @transform_1, window_bounds = array<i64: 128, 128>}, {pipeline_mode = #tpu.pipeline_mode<synchronous>, transform_indices = @transform_2, window_bounds = array<i64: 32, 8>}, {pipeline_mode = #tpu.pipeline_mode<synchronous>, transform_indices = @transform_3, window_bounds = array<i64: 32, 1>}, {pipeline_mode = #tpu.pipeline_mode<synchronous>, transform_indices = @transform_4, window_bounds = array<i64: 1, 32>}, {transform_indices = @transform_5, window_bounds = array<i64: 1, 128>}]} {
    %c0_i32 = arith.constant 0 : i32
    %0 = arith.cmpi eq, %arg1, %c0_i32 : i32
    %1 = arith.extui %0 : i1 to i32
    %c0_i32_0 = arith.constant 0 : i32
    %2 = arith.cmpi ne, %1, %c0_i32_0 : i32
    scf.if %2 {
      %cst_10 = arith.constant 0.000000e+00 : f32
      %12 = vector.broadcast %cst_10 : f32 to vector<8x128xf32>
      %c0_11 = arith.constant 0 : index
      %c0_12 = arith.constant 0 : index
      %13 = vector.load %arg8[%c0_11, %c0_12] : memref<8x128xf32, #tpu.memory_space<vmem>>, vector<8x128xf32>
      tpu.vector_store %arg8[%c0_11, %c0_12], %12 {strides = array<i32>} : memref<8x128xf32, #tpu.memory_space<vmem>>, vector<8x128xf32>,
    } else {
    }
    %c0 = arith.constant 0 : index
    %c0_1 = arith.constant 0 : index
    %3 = vector.load %arg8[%c0, %c0_1] : memref<8x128xf32, #tpu.memory_space<vmem>>, vector<8x128xf32>
    %c0_2 = arith.constant 0 : index
    %c0_3 = arith.constant 0 : index
    %4 = vector.load %arg2[%c0_2, %c0_3] : memref<8x128xbf16, #tpu.memory_space<vmem>>, vector<8x128xbf16>
    %c0_4 = arith.constant 0 : index
    %c0_5 = arith.constant 0 : index
    %5 = vector.load %arg3[%c0_4, %c0_5] : memref<128x128xbf16, #tpu.memory_space<vmem>>, vector<128x128xbf16>
    %cst = arith.constant dense<0.000000e+00> : vector<8x128xf32>
    %6 = tpu.matmul %4, %5, %cst {dimension_numbers = #tpu.dot_dimension_numbers<[1], [1], [0], [0], [0, 0, 1, 0], [], []>} : vector<8x128xbf16>, vector<128x128xbf16>, vector<8x128xf32> -> vector<8x128xf32>
    %7 = arith.addf %3, %6 : vector<8x128xf32>
    %c0_6 = arith.constant 0 : index
    %c0_7 = arith.constant 0 : index
    %8 = vector.load %arg8[%c0_6, %c0_7] : memref<8x128xf32, #tpu.memory_space<vmem>>, vector<8x128xf32>
    tpu.vector_store %arg8[%c0_6, %c0_7], %7 {strides = array<i32>} : memref<8x128xf32, #tpu.memory_space<vmem>>, vector<8x128xf32>,
    %c0_i32_8 = arith.constant 0 : i32
    %9 = arith.cmpi eq, %arg1, %c0_i32_8 : i32
    %10 = arith.extui %9 : i1 to i32
    %c0_i32_9 = arith.constant 0 : i32
    %11 = arith.cmpi ne, %10, %c0_i32_9 : i32
    scf.if %11 {
      %c0_10 = arith.constant 0 : index
      %c0_11 = arith.constant 0 : index
      %12 = vector.load %arg4[%c0_10, %c0_11] : memref<32x8xbf16, #tpu.memory_space<vmem>>, vector<32x8xbf16>
      %c0_12 = arith.constant 0 : index
      %c0_13 = arith.constant 0 : index
      %13 = vector.load %arg8[%c0_12, %c0_13] : memref<8x128xf32, #tpu.memory_space<vmem>>, vector<8x128xf32>
      %14 = arith.truncf %13 : vector<8x128xf32> to vector<8x128xbf16>
      %cst_14 = arith.constant dense<0.000000e+00> : vector<32x128xf32>
      %15 = tpu.matmul %12, %14, %cst_14 {dimension_numbers = #tpu.dot_dimension_numbers<[1], [0], [0], [1], [0, 0, 1, 1], [], []>} : vector<32x8xbf16>, vector<8x128xbf16>, vector<32x128xf32> -> vector<32x128xf32>
      %c0_15 = arith.constant 0 : index
      %c0_16 = arith.constant 0 : index
      %16 = vector.load %arg5[%c0_15, %c0_16] : memref<32x1xf32, #tpu.memory_space<vmem>>, vector<32x1xf32>
      %17 = vector.broadcast %16 : vector<32x1xf32> to vector<32x128xf32>
      %18 = arith.addf %15, %17 : vector<32x128xf32>
      %cst_17 = arith.constant 0.000000e+00 : f32
      %19 = vector.broadcast %cst_17 : f32 to vector<32x128xf32>
      %20 = arith.maximumf %18, %19 : vector<32x128xf32>
      %c0_18 = arith.constant 0 : index
      %c0_19 = arith.constant 0 : index
      %21 = vector.load %arg6[%c0_18, %c0_19] : memref<1x32xbf16, #tpu.memory_space<vmem>>, vector<1x32xbf16>
      %22 = arith.truncf %20 : vector<32x128xf32> to vector<32x128xbf16>
      %cst_20 = arith.constant dense<0.000000e+00> : vector<1x128xf32>
      %23 = tpu.matmul %21, %22, %cst_20 {dimension_numbers = #tpu.dot_dimension_numbers<[1], [0], [0], [1], [0, 0, 1, 1], [], []>} : vector<1x32xbf16>, vector<32x128xbf16>, vector<1x128xf32> -> vector<1x128xf32>
      %c0_21 = arith.constant 0 : index
      %c0_22 = arith.constant 0 : index
      %24 = vector.load %arg7[%c0_21, %c0_22] : memref<1x128xf32, #tpu.memory_space<vmem>>, vector<1x128xf32>
      tpu.vector_store %arg7[%c0_21, %c0_22], %23 {strides = array<i32>} : memref<1x128xf32, #tpu.memory_space<vmem>>, vector<1x128xf32>,
    } else {
    }
    return
  }
  func.func @transform_0(%arg0: i32, %arg1: i32) -> (i32, i32) {
    %c0_i32 = arith.constant 0 : i32
    %c0_i32_0 = arith.constant 0 : i32
    return %c0_i32, %arg1 : i32, i32
  }
  func.func @transform_1(%arg0: i32, %arg1: i32) -> (i32, i32) {
    %c0_i32 = arith.constant 0 : i32
    return %arg0, %arg1 : i32, i32
  }
  func.func @transform_2(%arg0: i32, %arg1: i32) -> (i32, i32) {
    %c0_i32 = arith.constant 0 : i32
    %c0_i32_0 = arith.constant 0 : i32
    %c0_i32_1 = arith.constant 0 : i32
    return %c0_i32, %c0_i32_0 : i32, i32
  }
  func.func @transform_3(%arg0: i32, %arg1: i32) -> (i32, i32) {
    %c0_i32 = arith.constant 0 : i32
    %c0_i32_0 = arith.constant 0 : i32
    %c0_i32_1 = arith.constant 0 : i32
    return %c0_i32, %c0_i32_0 : i32, i32
  }
  func.func @transform_4(%arg0: i32, %arg1: i32) -> (i32, i32) {
    %c0_i32 = arith.constant 0 : i32
    %c0_i32_0 = arith.constant 0 : i32
    %c0_i32_1 = arith.constant 0 : i32
    return %c0_i32, %c0_i32_0 : i32, i32
  }
  func.func @transform_5(%arg0: i32, %arg1: i32) -> (i32, i32) {
    %c0_i32 = arith.constant 0 : i32
    %c0_i32_0 = arith.constant 0 : i32
    return %c0_i32, %arg0 : i32, i32
  }
}

</mosaic_0001>

<llo_original>
// kernel: tpu_custom_call.1
$region0: #{tpu_custom_call.1}
  #allocation0 [shape = 'u32[]', space=smem, size = 0x4, offset = 0x4, fixed_abs, tag = 'smem constant byte address 0x4 - core index']
  #allocation1 [shape = 'u32[144,128]{1,0:T(1,128)}', space=vmem, size = 0x12000, scoped, tag = 'internal scratch']
  #allocation2 [shape = 'f32[8,128]{1,0:T(8,128)}', space=vmem, size = 0x1000, scoped, tag = 'scratch operand']
  %s0 = inlined_call_operand.vmem [shape: bf16[8,128], index: 0, kind: input, shape index: {}]
  %s1 = inlined_call_operand.hbm [shape: bf16[128,128], index: 1, kind: input, shape index: {}]
  %s2 = inlined_call_operand.vmem [shape: bf16[32,8], index: 2, kind: input, shape index: {}]
  %s3 = inlined_call_operand.vmem [shape: f32[32,1], index: 3, kind: input, shape index: {}]
  %s4 = inlined_call_operand.vmem [shape: bf16[1,32], index: 4, kind: input, shape index: {}]
  %s5 = inlined_call_operand.hbm [shape: f32[1,128], index: 5, kind: output, shape index: {}]
  %s6 = sld [smem:[#allocation0]]
  $region42: #{tpu_custom_call.1} parent=0
    _
  %s8 = ssub.s32 1, %s6
  %s9 = scalar_select 0, %s8, %s6
  $region1: #{tpu_custom_call.1} parent=0
    #allocation3 [shape = 'u8[32768]{0}', space=vmem, size = 0x8000, scoped, tag = 'input window, operand 1, single buffered']
    #allocation4 [shape = 's32[1]{0}', space=sflag, size = 0x4, scoped, tag = 'scoped memory for tpu_custom_call.1']
    #allocation5 [shape = 's32[1]{0}', space=sflag, size = 0x4, scoped, tag = 'scoped memory for tpu_custom_call.1']
    #allocation6 [shape = 'u8[512]{0}', space=vmem, size = 0x400, scoped, tag = 'output window, operand 0, single buffered']
    %10 = vsyncpa [#allocation4], 0
    %11 = vsyncpa [#allocation5], 0
    // Predicated region
    $region2: #{tpu_custom_call.1} parent=1 // pred_check
      _
    $region3: #{tpu_custom_call.1} parent=1 // pred_check_branch
      %13 = sbr.rel (0) target = $region5
    $region4: #{tpu_custom_call.1} parent=1 // pred_region
      _
    $region5: #{tpu_custom_call.1} parent=1 // pred_fallthru
      _
    // Predicated region
    $region6: #{tpu_custom_call.1} parent=1 // pred_check
      _
    $region7: #{tpu_custom_call.1} parent=1 // pred_check_branch
      %15 = sbr.rel (0) target = $region9
    $region8: #{tpu_custom_call.1} parent=1 // pred_region
      %s17 = ssub.s32 1024, 1024
      %18 = vsyncadd [#allocation4], %s17
      %s19 = sshll.u32 [#allocation3], 4
      %s20 = int_to_ptr.vmem [resolvable:$true] %s19
      %25 = dma.hbm_to_vmem [thread:$0]  %s1, 1024, %s20, [#allocation4], 64, 64, 4
    $region9: #{tpu_custom_call.1} parent=1 // pred_fallthru
      _
    // Predicated region
    $region10: #{tpu_custom_call.1} parent=1 // pred_check
      _
    $region11: #{tpu_custom_call.1} parent=1 // pred_check_branch
      %27 = sbr.rel (0) target = $region13
    $region12: #{tpu_custom_call.1} parent=1 // pred_region
      _
    $region13: #{tpu_custom_call.1} parent=1 // pred_fallthru
      _
    // Predicated region
    $region14: #{tpu_custom_call.1} parent=1 // pred_check
      _
    $region15: #{tpu_custom_call.1} parent=1 // pred_check_branch
      %29 = sbr.rel (0) target = $region17
    $region16: #{tpu_custom_call.1} parent=1 // pred_region
      _
    $region17: #{tpu_custom_call.1} parent=1 // pred_fallthru
      _
    // Predicated region
    $region18: #{tpu_custom_call.1} parent=1 // pred_check
      _
    $region19: #{tpu_custom_call.1} parent=1 // pred_check_branch
      %31 = sbr.rel (0) target = $region21
    $region20: #{tpu_custom_call.1} parent=1 // pred_region
      _
    $region21: #{tpu_custom_call.1} parent=1 // pred_fallthru
      _
    // Predicated region
    $region22: #{tpu_custom_call.1} parent=1 // pred_check
      _
    $region23: #{tpu_custom_call.1} parent=1 // pred_check_branch
      %33 = sbr.rel (0) target = $region25
    $region24: #{tpu_custom_call.1} parent=1 // pred_region
      %34 = dma.done [#allocation4], 1024
    $region25: #{tpu_custom_call.1} parent=1 // pred_fallthru
      _
    %p36 = scmp.eq.s32.totalorder 0, 0
    // Predicated region
    $region26: #{tpu_custom_call.1} parent=1 // pred_check
      %p37 = pneg %p36
    $region27: #{tpu_custom_call.1} parent=1 // pred_check_branch
      %39 = sbr.rel (%p37) target = $region29
    $region28: #{tpu_custom_call.1} parent=1 // pred_region
      %40 = vst [vmem:[#allocation2] sm:$0xff] 0.0
    $region29: #{tpu_custom_call.1} parent=1 // pred_fallthru
      _
    %v41 = vld [vmem:[#allocation2] sm:$0xff]
    %v42 = vld [vmem:[%s0] sm:$0xf]
    %v43 = vld [vmem:[#allocation3] sm:$0xf]
    %v44 = vld [vmem:[#allocation3 + $0x4] sm:$0xf]
    %v45 = vld [vmem:[#allocation3 + $0x8] sm:$0xf]
    %v46 = vld [vmem:[#allocation3 + $0xc] sm:$0xf]
    %v47 = vld [vmem:[#allocation3 + $0x10] sm:$0xf]
    %v48 = vld [vmem:[#allocation3 + $0x14] sm:$0xf]
    %v49 = vld [vmem:[#allocation3 + $0x18] sm:$0xf]
    %v50 = vld [vmem:[#allocation3 + $0x1c] sm:$0xf]
    %v51 = vld [vmem:[#allocation3 + $0x20] sm:$0xf]
    %v52 = vld [vmem:[#allocation3 + $0x24] sm:$0xf]
    %v53 = vld [vmem:[#allocation3 + $0x28] sm:$0xf]
    %v54 = vld [vmem:[#allocation3 + $0x2c] sm:$0xf]
    %v55 = vld [vmem:[#allocation3 + $0x30] sm:$0xf]
    %v56 = vld [vmem:[#allocation3 + $0x34] sm:$0xf]
    %v57 = vld [vmem:[#allocation3 + $0x38] sm:$0xf]
    %v58 = vld [vmem:[#allocation3 + $0x3c] sm:$0xf]
    %v75 = vunpack.c.l.b16 %v43
    %v76 = vunpack.c.l.b16 %v44
    %v77 = vunpack.c.l.b16 %v45
    %v78 = vunpack.c.l.b16 %v46
    %v79 = vunpack.c.l.b16 %v47
    %v80 = vunpack.c.l.b16 %v48
    %v81 = vunpack.c.l.b16 %v49
    %v82 = vunpack.c.l.b16 %v50
    %v83 = vunpack.c.l.b16 %v51
    %v84 = vunpack.c.l.b16 %v52
    %v85 = vunpack.c.l.b16 %v53
    %v86 = vunpack.c.l.b16 %v54
    %v87 = vunpack.c.l.b16 %v55
    %v88 = vunpack.c.l.b16 %v56
    %v89 = vunpack.c.l.b16 %v57
    %v90 = vunpack.c.l.b16 %v58
    %v91 = vpack.c.b16 %v76, %v75
    %v92 = vpack.c.b16 %v78, %v77
    %v93 = vpack.c.b16 %v80, %v79
    %v94 = vpack.c.b16 %v82, %v81
    %v95 = vpack.c.b16 %v84, %v83
    %v96 = vpack.c.b16 %v86, %v85
    %v97 = vpack.c.b16 %v88, %v87
    %v98 = vpack.c.b16 %v90, %v89
    %107 = vmatprep.subr.bf16.mxu0 0
    %108 = vmatpush1.bf16.xpose.msra.mxu0 %v91
    %109 = vmatprep.subr.bf16.mxu0 0
    %110 = vmatpush1.bf16.xpose.msra.mxu0 %v92
    %111 = vmatprep.subr.bf16.mxu0 0
    %112 = vmatpush1.bf16.xpose.msra.mxu0 %v93
    %113 = vmatprep.subr.bf16.mxu0 0
    %114 = vmatpush1.bf16.xpose.msra.mxu0 %v94
    %115 = vmatprep.subr.bf16.mxu0 0
    %116 = vmatpush1.bf16.xpose.msra.mxu0 %v95
    %117 = vmatprep.subr.bf16.mxu0 0
    %118 = vmatpush1.bf16.xpose.msra.mxu0 %v96
    %119 = vmatprep.subr.bf16.mxu0 0
    %120 = vmatpush1.bf16.xpose.msra.mxu0 %v97
    %121 = vmatprep.subr.bf16.mxu0 0
    %122 = vmatpush1.bf16.xpose.msra.mxu0 %v98
    %123 = vmatprep.subr.bf16.mxu0 0
    %124 = vmatpush1.bf16.xpose.msra.mxu0 0
    %125 = vmatprep.subr.bf16.mxu0 0
    %126 = vmatpush1.bf16.xpose.msra.mxu0 0
    %127 = vmatprep.subr.bf16.mxu0 0
    %128 = vmatpush1.bf16.xpose.msra.mxu0 0
    %129 = vmatprep.subr.bf16.mxu0 0
    %130 = vmatpush1.bf16.xpose.msra.mxu0 0
    %131 = vmatprep.subr.bf16.mxu0 0
    %132 = vmatpush1.bf16.xpose.msra.mxu0 0
    %133 = vmatprep.subr.bf16.mxu0 0
    %134 = vmatpush1.bf16.xpose.msra.mxu0 0
    %135 = vmatprep.subr.bf16.mxu0 0
    %136 = vmatpush1.bf16.xpose.msra.mxu0 0
    %137 = vmatprep.subr.bf16.mxu0 0
    %138 = vmatpush1.bf16.xpose.msra.mxu0 0
    %139 = vmatprep.mubr.bf16.mxu0 0
    %140 = vmatmul.mubr.bf16.gmra.mrb[0].mxu0 %v42
    %v141 = vpop.f32.mrb[0].mxu0
    %v142 = vadd.f32 0.0, %v141
    %v143 = vpop.f32.mrb[0].mxu0
    %v144 = vpop.f32.mrb[0].mxu0
    %v145 = vpop.f32.mrb[0].mxu0
    %146 = vdwg.mxu0
    %v147 = vadd.f32 %v41, %v142
    %148 = vst [vmem:[#allocation2] sm:$0xff] %v147
    // Predicated region
    $region30: #{tpu_custom_call.1} parent=1 // pred_check
      %p149 = pneg %p36
    $region31: #{tpu_custom_call.1} parent=1 // pred_check_branch
      %151 = sbr.rel (%p149) target = $region33
    $region32: #{tpu_custom_call.1} parent=1 // pred_region
      %v152 = vld [vmem:[%s2] sm:$0xf]
      %v153 = vld [vmem:[%s2 + $0x4] sm:$0xf]
      %v154 = vld [vmem:[%s2 + $0x8] sm:$0xf]
      %v155 = vld [vmem:[%s2 + $0xc] sm:$0xf]
      %v156 = vld [vmem:[#allocation2] sm:$0xff]
      %v157 = vpack.c.bf16 %v156, %v156
      %v158 = vld [vmem:[%s3] sm:$0xff]
      %v159 = vld [vmem:[%s3 + $0x8] sm:$0xff]
      %v160 = vld [vmem:[%s3 + $0x10] sm:$0xff]
      %v161 = vld [vmem:[%s3 + $0x18] sm:$0xff]
      %163 = vset.pattern.permute.xlu0 0
      %164 = vperm.xlu0 %163, %v158
      %v165 = vpop.permute.xlu0 %164
      %168 = vset.pattern.permute.xlu0 0
      %169 = vperm.xlu0 %168, %v159
      %v170 = vpop.permute.xlu0 %169
      %173 = vset.pattern.permute.xlu0 0
      %174 = vperm.xlu0 %173, %v160
      %v175 = vpop.permute.xlu0 %174
      %178 = vset.pattern.permute.xlu0 0
      %179 = vperm.xlu0 %178, %v161
      %v180 = vpop.permute.xlu0 %179
      %v186 = vunpack.c.l.b16 %v152
      %v187 = vunpack.c.l.b16 %v153
      %v188 = vunpack.c.l.b16 %v154
      %v189 = vunpack.c.l.b16 %v155
      %v190 = vpack.c.b16 %v187, %v186
      %v191 = vpack.c.b16 %v189, %v188
      %vm192 = vcmask 64512
      %v194 = vsel %vm192, %v190, 0
      %v197 = vsel %vm192, %v191, 0
      %vm199 = vcmask 1043456
      %v201 = vsel %vm199, %v157, 0
      %203 = vmatprep.subr.bf16.mxu0 0
      %204 = vmatpush1.bf16.msra.mxu0 %v201
      %205 = vmatprep.subr.bf16.mxu0 0
      %206 = vmatpush1.bf16.msra.mxu0 0
      %207 = vmatprep.subr.bf16.mxu0 0
      %208 = vmatpush1.bf16.msra.mxu0 0
      %209 = vmatprep.subr.bf16.mxu0 0
      %210 = vmatpush1.bf16.msra.mxu0 0
      %211 = vmatprep.subr.bf16.mxu0 0
      %212 = vmatpush1.bf16.msra.mxu0 0
      %213 = vmatprep.subr.bf16.mxu0 0
      %214 = vmatpush1.bf16.msra.mxu0 0
      %215 = vmatprep.subr.bf16.mxu0 0
      %216 = vmatpush1.bf16.msra.mxu0 0
      %217 = vmatprep.subr.bf16.mxu0 0
      %218 = vmatpush1.bf16.msra.mxu0 0
      %219 = vmatprep.subr.bf16.mxu0 0
      %220 = vmatpush1.bf16.msra.mxu0 0
      %221 = vmatprep.subr.bf16.mxu0 0
      %222 = vmatpush1.bf16.msra.mxu0 0
      %223 = vmatprep.subr.bf16.mxu0 0
      %224 = vmatpush1.bf16.msra.mxu0 0
      %225 = vmatprep.subr.bf16.mxu0 0
      %226 = vmatpush1.bf16.msra.mxu0 0
      %227 = vmatprep.subr.bf16.mxu0 0
      %228 = vmatpush1.bf16.msra.mxu0 0
      %229 = vmatprep.subr.bf16.mxu0 0
      %230 = vmatpush1.bf16.msra.mxu0 0
      %231 = vmatprep.subr.bf16.mxu0 0
      %232 = vmatpush1.bf16.msra.mxu0 0
      %233 = vmatprep.subr.bf16.mxu0 0
      %234 = vmatpush1.bf16.msra.mxu0 0
      %235 = vmatprep.mubr.bf16.mxu0 0
      %236 = vmatmul.mubr.bf16.gmra.mrb[0].mxu0 %v194
      %v237 = vpop.f32.mrb[0].mxu0
      %v238 = vadd.f32 %v165, %v237
      %v239 = vpop.f32.mrb[0].mxu0
      %v240 = vpop.f32.mrb[0].mxu0
      %v241 = vadd.f32 %v170, %v240
      %v242 = vpop.f32.mrb[0].mxu0
      %243 = vmatprep.mubr.bf16.mxu0 0
      %244 = vmatmul.mubr.bf16.gmra.mrb[0].mxu0 %v197
      %v245 = vpop.f32.mrb[0].mxu0
      %v246 = vadd.f32 %v175, %v245
      %v247 = vpop.f32.mrb[0].mxu0
      %v248 = vpop.f32.mrb[0].mxu0
      %v249 = vadd.f32 %v180, %v248
      %v250 = vpop.f32.mrb[0].mxu0
      %251 = vdwg.mxu0
      %v252 = vmax.f32 %v238, 0.0
      %v253 = vmax.f32 %v241, 0.0
      %v254 = vmax.f32 %v246, 0.0
      %v255 = vmax.f32 %v249, 0.0
      %v256 = vld [vmem:[%s4] sm:$0x1]
      %v257 = vpack.c.bf16 %v253, %v252
      %v258 = vpack.c.bf16 %v255, %v254
      %vm259 = vcmask 261120
      %v261 = vsel %vm259, %v256, 0
      %263 = vmatprep.subr.bf16.mxu0 0
      %264 = vmatpush1.bf16.msra.mxu0 %v257
      %265 = vmatprep.subr.bf16.mxu0 0
      %266 = vmatpush1.bf16.msra.mxu0 %v258
      %267 = vmatprep.subr.bf16.mxu0 0
      %268 = vmatpush1.bf16.msra.mxu0 0
      %269 = vmatprep.subr.bf16.mxu0 0
      %270 = vmatpush1.bf16.msra.mxu0 0
      %271 = vmatprep.subr.bf16.mxu0 0
      %272 = vmatpush1.bf16.msra.mxu0 0
      %273 = vmatprep.subr.bf16.mxu0 0
      %274 = vmatpush1.bf16.msra.mxu0 0
      %275 = vmatprep.subr.bf16.mxu0 0
      %276 = vmatpush1.bf16.msra.mxu0 0
      %277 = vmatprep.subr.bf16.mxu0 0
      %278 = vmatpush1.bf16.msra.mxu0 0
      %279 = vmatprep.subr.bf16.mxu0 0
      %280 = vmatpush1.bf16.msra.mxu0 0
      %281 = vmatprep.subr.bf16.mxu0 0
      %282 = vmatpush1.bf16.msra.mxu0 0
      %283 = vmatprep.subr.bf16.mxu0 0
      %284 = vmatpush1.bf16.msra.mxu0 0
      %285 = vmatprep.subr.bf16.mxu0 0
      %286 = vmatpush1.bf16.msra.mxu0 0
      %287 = vmatprep.subr.bf16.mxu0 0
      %288 = vmatpush1.bf16.msra.mxu0 0
      %289 = vmatprep.subr.bf16.mxu0 0
      %290 = vmatpush1.bf16.msra.mxu0 0
      %291 = vmatprep.subr.bf16.mxu0 0
      %292 = vmatpush1.bf16.msra.mxu0 0
      %293 = vmatprep.subr.bf16.mxu0 0
      %294 = vmatpush1.bf16.msra.mxu0 0
      %295 = vmatprep.mubr.bf16.mxu0 0
      %296 = vmatmul.mubr.bf16.gmra.mrb[0].mxu0 %v261
      %v297 = vpop.f32.mrb[0].mxu0
      %v298 = vadd.f32 0.0, %v297
      %v299 = vpop.f32.mrb[0].mxu0
      %v300 = vpop.f32.mrb[0].mxu0
      %v301 = vpop.f32.mrb[0].mxu0
      %302 = vdwg.mxu0
      %303 = vst [vmem:[#allocation6] sm:$0x1] %v298
    $region33: #{tpu_custom_call.1} parent=1 // pred_fallthru
      _
    // Predicated region
    $region34: #{tpu_custom_call.1} parent=1 // pred_check
      _
    $region35: #{tpu_custom_call.1} parent=1 // pred_check_branch
      %305 = sbr.rel (0) target = $region37
    $region36: #{tpu_custom_call.1} parent=1 // pred_region
      %s307 = ssub.s32 16, 16
      %308 = vsyncadd [#allocation5], %s307
      %s310 = sshll.u32 [#allocation6], 4
      %s311 = int_to_ptr.vmem [resolvable:$true] %s310
      %313 = dma.vmem_to_hbm [thread:$0]  %s311, 16, %s5, [#allocation5]
    $region37: #{tpu_custom_call.1} parent=1 // pred_fallthru
      _
    // Predicated region
    $region38: #{tpu_custom_call.1} parent=1 // pred_check
      _
    $region39: #{tpu_custom_call.1} parent=1 // pred_check_branch
      %315 = sbr.rel (0) target = $region41
    $region40: #{tpu_custom_call.1} parent=1 // pred_region
      %316 = dma.done [#allocation5], 16
    $region41: #{tpu_custom_call.1} parent=1 // pred_fallthru
      _
    %317 = vsyncpa [#allocation4], 1
    %318 = vsyncpa [#allocation5], 1

</llo_original>
